<compile_context>
chip_gen: v6e
topology: v6e:2x2x1
jax: 0.10.0
libtpu: 0.0.40
codegen_flags: <defaults>
</compile_context>

<pallas_src>
import functools

import jax
import jax.numpy as jnp
from jax import lax
from jax.experimental import pallas as pl
from jax.experimental.pallas import tpu as pltpu

LANE = 128      # TPU lane width; every hidden dim is zero-padded to this
D_IN = 128      # observation feature size
Z_SIZE = 32     # true latent size (z = z_pad[:, :32])
N_LAYERS = 6    # 3 encoder + 3 decoder Linear layers


def _round_up(x, m):
    return (x + m - 1) // m * m


def _wm_kernel(state_ref, w_ref, b_ref, z_ref, psum_ref, *, tile_b, batch):
    i = pl.program_id(0)

    # /255 normalization in-kernel; input stream stays uint8 (1 B/elem over HBM).
    s = state_ref[...].astype(jnp.float32) * (1.0 / 255.0)
    x = s.astype(jnp.bfloat16)

    def layer(x_bf, k, relu):
        # bf16 operands, f32 accumulation on the MXU.
        y = jnp.dot(x_bf, w_ref[k], preferred_element_type=jnp.float32)
        y = y + b_ref[k].astype(jnp.float32)
        if relu:
            y = jnp.maximum(y, 0.0)
        return y

    # ---- encoder: 3 x (Linear + ReLU) ----
    x = layer(x, 0, True).astype(jnp.bfloat16)
    x = layer(x, 1, True).astype(jnp.bfloat16)
    z_bf = layer(x, 2, True).astype(jnp.bfloat16)

    # TODO(synk): z_layer is undefined in the source module's __init__; the encoder
    # already emits z_size features, so z = encoder output (identity).
    z_ref[...] = z_bf                       # lane-dense bf16 store; caller slices [:, :32]

    # ---- decoder: Linear+ReLU, Linear+ReLU, Linear ----
    d = layer(z_bf, 3, True).astype(jnp.bfloat16)
    d = layer(d, 4, True).astype(jnp.bfloat16)
    x_hat = layer(d, 5, False)              # f32

    diff = x_hat - s                        # f32 reconstruction error

    def partial_sum(v):
        # Reduce (tile_b,128) -> (8,128) so the partial-sum store stays a full vreg block.
        return jnp.sum(v.reshape(tile_b // 8, 8, LANE), axis=0)

    if batch % tile_b == 0:
        # No padded rows anywhere: skip the mask entirely.
        psum_ref[...] = partial_sum(diff * diff)
    else:
        last = pl.num_programs(0) - 1

        @pl.when(i != last)
        def _():
            psum_ref[...] = partial_sum(diff * diff)

        @pl.when(i == last)
        def _():
            # Mask padded batch rows only on the last tile.
            row = i * tile_b + lax.broadcasted_iota(jnp.int32, (tile_b, LANE), 0)
            dm = jnp.where(row < batch, diff, 0.0)
            psum_ref[...] = partial_sum(dm * dm)


def rnn_wm_forward(state, w_stack, b_stack, *, tile_b_max=4096):
    """state: [batch, 128] raw observations (uint8 or pre-/255 float).
    w_stack: (6,128,128) bf16, b_stack: (6,1,128) bf16 from pad_params.

    Returns (z [batch, 32] float32, r_loss scalar float32)."""
    batch = state.shape[0]

    # At least 2 tiles for large batches so the 'parallel' axis shards across v7x's
    # two TensorCores; the cost on 1-TC chips (v5e/v6e) is a single extra ~0.35us step.
    min_tiles = 2 if batch >= 2048 else 1
    num_tiles = max(pl.cdiv(batch, tile_b_max), min_tiles)
    # 32-row alignment keeps the uint8 input on its native (32,128) tile; this sizing
    # wastes at most 31 padded rows.
    tile_b = _round_up(pl.cdiv(batch, num_tiles), 32)
    num_tiles = pl.cdiv(batch, tile_b)
    padded_batch = num_tiles * tile_b
    if padded_batch != batch:
        state = jnp.pad(state, ((0, padded_batch - batch), (0, 0)))

    state_spec = pl.BlockSpec((tile_b, D_IN), lambda i: (i, 0))
    w_spec = pl.BlockSpec((N_LAYERS, LANE, LANE), lambda i: (0, 0, 0))   # VMEM-resident
    b_spec = pl.BlockSpec((N_LAYERS, 1, LANE), lambda i: (0, 0, 0))      # VMEM-resident
    out_specs = (
        pl.BlockSpec((tile_b, LANE), lambda i: (i, 0)),   # z (bf16, 128 lanes)
        pl.BlockSpec((8, LANE), lambda i: (i, 0)),        # per-tile partial SSE
    )

    flops = 2 * padded_batch * LANE * LANE * N_LAYERS
    bytes_accessed = (padded_batch * D_IN * state.dtype.itemsize    # state in
                      + padded_batch * LANE * 2                     # z out (bf16)
                      + num_tiles * 8 * LANE * 4                    # partial sums out
                      + N_LAYERS * (LANE * LANE + LANE) * 2)        # resident bf16 params

    kernel = functools.partial(_wm_kernel, tile_b=tile_b, batch=batch)
    z_pad, psum = pl.pallas_call(
        kernel,
        grid=(num_tiles,),
        out_shape=(
            jax.ShapeDtypeStruct((padded_batch, LANE), jnp.bfloat16),
            jax.ShapeDtypeStruct((num_tiles * 8, LANE), jnp.float32),
        ),
        in_specs=[state_spec, w_spec, b_spec],
        out_specs=out_specs,
        compiler_params=pltpu.CompilerParams(
            dimension_semantics=("parallel",),        # batch tiles are independent
            vmem_limit_bytes=48 * 1024 * 1024,        # safe on v7x's 64 MiB physical VMEM
        ),
        cost_estimate=pl.CostEstimate(
            flops=flops, transcendentals=0, bytes_accessed=bytes_accessed),
    )(state, w_stack, b_stack)

    z = z_pad[:batch, :Z_SIZE].astype(jnp.float32)
    r_loss = jnp.sum(psum) / jnp.float32(batch * D_IN)
    return z, r_loss


def init_params(key):
    """Synthetic parameters matching the nn.Linear shapes.

    Weights are stored transposed relative to PyTorch ([in, out] instead of
    [out, in]) so the kernel computes x @ W; biases are [1, out] rows."""
    dims = [(128, 90), (90, 64), (64, 32),      # encoder
            (32, 32), (32, 64), (64, 128)]      # decoder
    params = []
    for (din, dout) in dims:
        key, kw, kb = jax.random.split(key, 3)
        scale = 1.0 / jnp.sqrt(jnp.float32(din))
        w = jax.random.uniform(kw, (din, dout), jnp.float32, -scale, scale)
        b = jax.random.uniform(kb, (1, dout), jnp.float32, -scale, scale)
        params += [w, b]
    return params


def pad_params(params):
    """Zero-pad every layer to 128x128 / 1x128, cast to bf16 and stack into two
    operands (W_stack (6,128,128), b_stack (6,1,128)).  Zero padding is a numerical
    identity: padded bias entries are 0, ReLU(0)=0, zero weight rows add nothing."""
    w_stack = jnp.zeros((N_LAYERS, LANE, LANE), jnp.bfloat16)
    b_stack = jnp.zeros((N_LAYERS, 1, LANE), jnp.bfloat16)
    for k in range(N_LAYERS):
        w, b = params[2 * k], params[2 * k + 1]
        din, dout = w.shape
        w_stack = w_stack.at[k, :din, :dout].set(w.astype(jnp.bfloat16))
        b_stack = b_stack.at[k, :, :dout].set(b.astype(jnp.bfloat16))
    return w_stack, b_stack


def reference_forward(state, params, *, mixed=True):
    """mixed=True mirrors the kernel's precision (bf16 operands, f32 accumulation,
    bf16-quantized params); mixed=False is the pure-f32 PyTorch-equivalent path."""
    s = state.astype(jnp.float32) / 255.0

    def layer(x, k, relu):
        w, b = params[2 * k], params[2 * k + 1]
        if mixed:
            y = jnp.dot(x.astype(jnp.bfloat16), w.astype(jnp.bfloat16),
                        preferred_element_type=jnp.float32)
            y = y + b.astype(jnp.bfloat16).astype(jnp.float32)
        else:
            y = jnp.dot(x, w, preferred_element_type=jnp.float32) + b
        return jnp.maximum(y, 0.0) if relu else y

    x = layer(s, 0, True)
    x = layer(x, 1, True)
    z = layer(x, 2, True)
    d = layer(z, 3, True)
    d = layer(d, 4, True)
    x_hat = layer(d, 5, False)
    r_loss = jnp.mean((x_hat - s) ** 2)
    return z, r_loss


if __name__ == "__main__":
    key = jax.random.PRNGKey(0)
    key, kstate = jax.random.split(key)
    batch = 8
    # Raw uint8 observations (matching the original numpy .astype(float32)/255 path).
    state = jax.random.randint(kstate, (batch, D_IN), 0, 256,
                               dtype=jnp.int32).astype(jnp.uint8)

    params = init_params(key)              # original (unpadded) f32 shapes, for reference
    w_stack, b_stack = pad_params(params)  # stacked, padded bf16 operands for the kernel

    fwd = jax.jit(rnn_wm_forward)
    z, r_loss = fwd(state, w_stack, b_stack)
    jax.block_until_ready((z, r_loss))

    assert z.shape == (batch, Z_SIZE) and z.dtype == jnp.float32

    # Tight check against a reference that mirrors the kernel's bf16/f32-acc precision.
    z_mix, loss_mix = reference_forward(state, params, mixed=True)
    assert jnp.allclose(z, z_mix, atol=1e-3, rtol=1e-3), "z mismatch vs mixed-precision ref"
    assert jnp.allclose(r_loss, loss_mix, atol=1e-3, rtol=1e-3), "r_loss mismatch vs mixed ref"

    # Loose check against the pure-f32 reference (bf16 operands => ~1e-2 tolerance).
    z_f32, loss_f32 = reference_forward(state, params, mixed=False)
    assert jnp.allclose(z, z_f32, atol=5e-2, rtol=5e-2), "z drifted too far from f32 ref"
    assert jnp.allclose(r_loss, loss_f32, atol=5e-2, rtol=5e-2), "r_loss drifted from f32 ref"

    print("KERNEL_OK")
</pallas_src>

<mosaic_0001>
module attributes {stable_mosaic.version = 11 : i64} {
  func.func @_wm_kernel(%arg0: i32, %arg1: memref<32x128xi8, #tpu.memory_space<vmem>>, %arg2: memref<6x128x128xbf16, #tpu.memory_space<vmem>>, %arg3: memref<6x1x128xbf16, #tpu.memory_space<vmem>>, %arg4: memref<32x128xbf16, #tpu.memory_space<vmem>>, %arg5: memref<8x128xf32, #tpu.memory_space<vmem>>) attributes {dimension_semantics = [#tpu.dimension_semantics<parallel>], iteration_bounds = array<i64: 1>, scalar_prefetch = 0 : i64, scratch_operands = 0 : i64, tpu.core_type = #tpu.core_type<tc>, window_params = [{transform_indices = @transform_0, window_bounds = array<i64: 32, 128>}, {pipeline_mode = #tpu.pipeline_mode<synchronous>, transform_indices = @transform_1, window_bounds = array<i64: 6, 128, 128>}, {pipeline_mode = #tpu.pipeline_mode<synchronous>, transform_indices = @transform_2, window_bounds = array<i64: 6, 1, 128>}, {transform_indices = @transform_3, window_bounds = array<i64: 32, 128>}, {transform_indices = @transform_4, window_bounds = array<i64: 8, 128>}]} {
    %c0 = arith.constant 0 : index
    %c0_0 = arith.constant 0 : index
    %0 = vector.load %arg1[%c0, %c0_0] : memref<32x128xi8, #tpu.memory_space<vmem>>, vector<32x128xi8>
    %1 = arith.uitofp %0 : vector<32x128xi8> to vector<32x128xf32>
    %cst = arith.constant 0.00392156886 : f32
    %2 = vector.broadcast %cst : f32 to vector<32x128xf32>
    %3 = arith.mulf %1, %2 : vector<32x128xf32>
    %4 = arith.truncf %3 : vector<32x128xf32> to vector<32x128xbf16>
    %c0_1 = arith.constant 0 : index
    %c0_2 = arith.constant 0 : index
    %c0_3 = arith.constant 0 : index
    %5 = vector.load %arg2[%c0_1, %c0_2, %c0_3] : memref<6x128x128xbf16, #tpu.memory_space<vmem>>, vector<1x128x128xbf16>
    %6 = vector.shape_cast %5 : vector<1x128x128xbf16> to vector<128x128xbf16>
    %cst_4 = arith.constant dense<0.000000e+00> : vector<32x128xf32>
    %7 = tpu.matmul %4, %6, %cst_4 {dimension_numbers = #tpu.dot_dimension_numbers<[1], [0], [0], [1], [0, 0, 1, 1], [], []>} : vector<32x128xbf16>, vector<128x128xbf16>, vector<32x128xf32> -> vector<32x128xf32>
    %c0_5 = arith.constant 0 : index
    %c0_6 = arith.constant 0 : index
    %c0_7 = arith.constant 0 : index
    %8 = vector.load %arg3[%c0_5, %c0_6, %c0_7] : memref<6x1x128xbf16, #tpu.memory_space<vmem>>, vector<1x1x128xbf16>
    %9 = vector.shape_cast %8 : vector<1x1x128xbf16> to vector<1x128xbf16>
    %10 = arith.extf %9 : vector<1x128xbf16> to vector<1x128xf32>
    %11 = vector.broadcast %10 : vector<1x128xf32> to vector<32x128xf32>
    %12 = arith.addf %7, %11 : vector<32x128xf32>
    %cst_8 = arith.constant 0.000000e+00 : f32
    %13 = vector.broadcast %cst_8 : f32 to vector<32x128xf32>
    %14 = arith.maximumf %12, %13 : vector<32x128xf32>
    %15 = arith.truncf %14 : vector<32x128xf32> to vector<32x128xbf16>
    %c1 = arith.constant 1 : index
    %c0_9 = arith.constant 0 : index
    %c0_10 = arith.constant 0 : index
    %16 = vector.load %arg2[%c1, %c0_9, %c0_10] : memref<6x128x128xbf16, #tpu.memory_space<vmem>>, vector<1x128x128xbf16>
    %17 = vector.shape_cast %16 : vector<1x128x128xbf16> to vector<128x128xbf16>
    %cst_11 = arith.constant dense<0.000000e+00> : vector<32x128xf32>
    %18 = tpu.matmul %15, %17, %cst_11 {dimension_numbers = #tpu.dot_dimension_numbers<[1], [0], [0], [1], [0, 0, 1, 1], [], []>} : vector<32x128xbf16>, vector<128x128xbf16>, vector<32x128xf32> -> vector<32x128xf32>
    %c1_12 = arith.constant 1 : index
    %c0_13 = arith.constant 0 : index
    %c0_14 = arith.constant 0 : index
    %19 = vector.load %arg3[%c1_12, %c0_13, %c0_14] : memref<6x1x128xbf16, #tpu.memory_space<vmem>>, vector<1x1x128xbf16>
    %20 = vector.shape_cast %19 : vector<1x1x128xbf16> to vector<1x128xbf16>
    %21 = arith.extf %20 : vector<1x128xbf16> to vector<1x128xf32>
    %22 = vector.broadcast %21 : vector<1x128xf32> to vector<32x128xf32>
    %23 = arith.addf %18, %22 : vector<32x128xf32>
    %cst_15 = arith.constant 0.000000e+00 : f32
    %24 = vector.broadcast %cst_15 : f32 to vector<32x128xf32>
    %25 = arith.maximumf %23, %24 : vector<32x128xf32>
    %26 = arith.truncf %25 : vector<32x128xf32> to vector<32x128xbf16>
    %c2 = arith.constant 2 : index
    %c0_16 = arith.constant 0 : index
    %c0_17 = arith.constant 0 : index
    %27 = vector.load %arg2[%c2, %c0_16, %c0_17] : memref<6x128x128xbf16, #tpu.memory_space<vmem>>, vector<1x128x128xbf16>
    %28 = vector.shape_cast %27 : vector<1x128x128xbf16> to vector<128x128xbf16>
    %cst_18 = arith.constant dense<0.000000e+00> : vector<32x128xf32>
    %29 = tpu.matmul %26, %28, %cst_18 {dimension_numbers = #tpu.dot_dimension_numbers<[1], [0], [0], [1], [0, 0, 1, 1], [], []>} : vector<32x128xbf16>, vector<128x128xbf16>, vector<32x128xf32> -> vector<32x128xf32>
    %c2_19 = arith.constant 2 : index
    %c0_20 = arith.constant 0 : index
    %c0_21 = arith.constant 0 : index
    %30 = vector.load %arg3[%c2_19, %c0_20, %c0_21] : memref<6x1x128xbf16, #tpu.memory_space<vmem>>, vector<1x1x128xbf16>
    %31 = vector.shape_cast %30 : vector<1x1x128xbf16> to vector<1x128xbf16>
    %32 = arith.extf %31 : vector<1x128xbf16> to vector<1x128xf32>
    %33 = vector.broadcast %32 : vector<1x128xf32> to vector<32x128xf32>
    %34 = arith.addf %29, %33 : vector<32x128xf32>
    %cst_22 = arith.constant 0.000000e+00 : f32
    %35 = vector.broadcast %cst_22 : f32 to vector<32x128xf32>
    %36 = arith.maximumf %34, %35 : vector<32x128xf32>
    %37 = arith.truncf %36 : vector<32x128xf32> to vector<32x128xbf16>
    %c0_23 = arith.constant 0 : index
    %c0_24 = arith.constant 0 : index
    %38 = vector.load %arg4[%c0_23, %c0_24] : memref<32x128xbf16, #tpu.memory_space<vmem>>, vector<32x128xbf16>
    tpu.vector_store %arg4[%c0_23, %c0_24], %37 {strides = array<i32>} : memref<32x128xbf16, #tpu.memory_space<vmem>>, vector<32x128xbf16>,
    %c3 = arith.constant 3 : index
    %c0_25 = arith.constant 0 : index
    %c0_26 = arith.constant 0 : index
    %39 = vector.load %arg2[%c3, %c0_25, %c0_26] : memref<6x128x128xbf16, #tpu.memory_space<vmem>>, vector<1x128x128xbf16>
    %40 = vector.shape_cast %39 : vector<1x128x128xbf16> to vector<128x128xbf16>
    %cst_27 = arith.constant dense<0.000000e+00> : vector<32x128xf32>
    %41 = tpu.matmul %37, %40, %cst_27 {dimension_numbers = #tpu.dot_dimension_numbers<[1], [0], [0], [1], [0, 0, 1, 1], [], []>} : vector<32x128xbf16>, vector<128x128xbf16>, vector<32x128xf32> -> vector<32x128xf32>
    %c3_28 = arith.constant 3 : index
    %c0_29 = arith.constant 0 : index
    %c0_30 = arith.constant 0 : index
    %42 = vector.load %arg3[%c3_28, %c0_29, %c0_30] : memref<6x1x128xbf16, #tpu.memory_space<vmem>>, vector<1x1x128xbf16>
    %43 = vector.shape_cast %42 : vector<1x1x128xbf16> to vector<1x128xbf16>
    %44 = arith.extf %43 : vector<1x128xbf16> to vector<1x128xf32>
    %45 = vector.broadcast %44 : vector<1x128xf32> to vector<32x128xf32>
    %46 = arith.addf %41, %45 : vector<32x128xf32>
    %cst_31 = arith.constant 0.000000e+00 : f32
    %47 = vector.broadcast %cst_31 : f32 to vector<32x128xf32>
    %48 = arith.maximumf %46, %47 : vector<32x128xf32>
    %49 = arith.truncf %48 : vector<32x128xf32> to vector<32x128xbf16>
    %c4 = arith.constant 4 : index
    %c0_32 = arith.constant 0 : index
    %c0_33 = arith.constant 0 : index
    %50 = vector.load %arg2[%c4, %c0_32, %c0_33] : memref<6x128x128xbf16, #tpu.memory_space<vmem>>, vector<1x128x128xbf16>
    %51 = vector.shape_cast %50 : vector<1x128x128xbf16> to vector<128x128xbf16>
    %cst_34 = arith.constant dense<0.000000e+00> : vector<32x128xf32>
    %52 = tpu.matmul %49, %51, %cst_34 {dimension_numbers = #tpu.dot_dimension_numbers<[1], [0], [0], [1], [0, 0, 1, 1], [], []>} : vector<32x128xbf16>, vector<128x128xbf16>, vector<32x128xf32> -> vector<32x128xf32>
    %c4_35 = arith.constant 4 : index
    %c0_36 = arith.constant 0 : index
    %c0_37 = arith.constant 0 : index
    %53 = vector.load %arg3[%c4_35, %c0_36, %c0_37] : memref<6x1x128xbf16, #tpu.memory_space<vmem>>, vector<1x1x128xbf16>
    %54 = vector.shape_cast %53 : vector<1x1x128xbf16> to vector<1x128xbf16>
    %55 = arith.extf %54 : vector<1x128xbf16> to vector<1x128xf32>
    %56 = vector.broadcast %55 : vector<1x128xf32> to vector<32x128xf32>
    %57 = arith.addf %52, %56 : vector<32x128xf32>
    %cst_38 = arith.constant 0.000000e+00 : f32
    %58 = vector.broadcast %cst_38 : f32 to vector<32x128xf32>
    %59 = arith.maximumf %57, %58 : vector<32x128xf32>
    %60 = arith.truncf %59 : vector<32x128xf32> to vector<32x128xbf16>
    %c5 = arith.constant 5 : index
    %c0_39 = arith.constant 0 : index
    %c0_40 = arith.constant 0 : index
    %61 = vector.load %arg2[%c5, %c0_39, %c0_40] : memref<6x128x128xbf16, #tpu.memory_space<vmem>>, vector<1x128x128xbf16>
    %62 = vector.shape_cast %61 : vector<1x128x128xbf16> to vector<128x128xbf16>
    %cst_41 = arith.constant dense<0.000000e+00> : vector<32x128xf32>
    %63 = tpu.matmul %60, %62, %cst_41 {dimension_numbers = #tpu.dot_dimension_numbers<[1], [0], [0], [1], [0, 0, 1, 1], [], []>} : vector<32x128xbf16>, vector<128x128xbf16>, vector<32x128xf32> -> vector<32x128xf32>
    %c5_42 = arith.constant 5 : index
    %c0_43 = arith.constant 0 : index
    %c0_44 = arith.constant 0 : index
    %64 = vector.load %arg3[%c5_42, %c0_43, %c0_44] : memref<6x1x128xbf16, #tpu.memory_space<vmem>>, vector<1x1x128xbf16>
    %65 = vector.shape_cast %64 : vector<1x1x128xbf16> to vector<1x128xbf16>
    %66 = arith.extf %65 : vector<1x128xbf16> to vector<1x128xf32>
    %67 = vector.broadcast %66 : vector<1x128xf32> to vector<32x128xf32>
    %68 = arith.addf %63, %67 : vector<32x128xf32>
    %69 = arith.subf %68, %3 : vector<32x128xf32>
    %c0_i32 = arith.constant 0 : i32
    %70 = arith.cmpi ne, %arg0, %c0_i32 : i32
    %71 = arith.extui %70 : i1 to i32
    %c0_i32_45 = arith.constant 0 : i32
    %72 = arith.cmpi ne, %71, %c0_i32_45 : i32
    scf.if %72 {
      %76 = arith.mulf %69, %69 : vector<32x128xf32>
      %77 = vector.shape_cast %76 : vector<32x128xf32> to vector<4x8x128xf32>
      %cst_48 = arith.constant dense<0.000000e+00> : vector<8x128xf32>
      %78 = vector.multi_reduction <add>, %77, %cst_48 [0] : vector<4x8x128xf32> to vector<8x128xf32>
      %c0_49 = arith.constant 0 : index
      %c0_50 = arith.constant 0 : index
      %79 = vector.load %arg5[%c0_49, %c0_50] : memref<8x128xf32, #tpu.memory_space<vmem>>, vector<8x128xf32>
      tpu.vector_store %arg5[%c0_49, %c0_50], %78 {strides = array<i32>} : memref<8x128xf32, #tpu.memory_space<vmem>>, vector<8x128xf32>,
    } else {
    }
    %c0_i32_46 = arith.constant 0 : i32
    %73 = arith.cmpi eq, %arg0, %c0_i32_46 : i32
    %74 = arith.extui %73 : i1 to i32
    %c0_i32_47 = arith.constant 0 : i32
    %75 = arith.cmpi ne, %74, %c0_i32_47 : i32
    scf.if %75 {
      %c32_i32 = arith.constant 32 : i32
      %76 = arith.muli %arg0, %c32_i32 : i32
      %77 = tpu.iota {dimensions = array<i32: 0>} : vector<32x128xi32>
      %78 = vector.broadcast %76 : i32 to vector<32x128xi32>
      %79 = arith.addi %78, %77 : vector<32x128xi32>
      %c8_i32 = arith.constant 8 : i32
      %80 = vector.broadcast %c8_i32 : i32 to vector<32x128xi32>
      %81 = arith.cmpi slt, %79, %80 : vector<32x128xi32>
      %cst_48 = arith.constant 0.000000e+00 : f32
      %82 = vector.broadcast %cst_48 : f32 to vector<32x128xf32>
      %83 = arith.select %81, %69, %82 : vector<32x128xi1>, vector<32x128xf32>
      %84 = arith.mulf %83, %83 : vector<32x128xf32>
      %85 = vector.shape_cast %84 : vector<32x128xf32> to vector<4x8x128xf32>
      %cst_49 = arith.constant dense<0.000000e+00> : vector<8x128xf32>
      %86 = vector.multi_reduction <add>, %85, %cst_49 [0] : vector<4x8x128xf32> to vector<8x128xf32>
      %c0_50 = arith.constant 0 : index
      %c0_51 = arith.constant 0 : index
      %87 = vector.load %arg5[%c0_50, %c0_51] : memref<8x128xf32, #tpu.memory_space<vmem>>, vector<8x128xf32>
      tpu.vector_store %arg5[%c0_50, %c0_51], %86 {strides = array<i32>} : memref<8x128xf32, #tpu.memory_space<vmem>>, vector<8x128xf32>,
    } else {
    }
    return
  }
  func.func @transform_0(%arg0: i32) -> (i32, i32) {
    %c0_i32 = arith.constant 0 : i32
    %c0_i32_0 = arith.constant 0 : i32
    return %arg0, %c0_i32 : i32, i32
  }
  func.func @transform_1(%arg0: i32) -> (i32, i32, i32) {
    %c0_i32 = arith.constant 0 : i32
    %c0_i32_0 = arith.constant 0 : i32
    %c0_i32_1 = arith.constant 0 : i32
    %c0_i32_2 = arith.constant 0 : i32
    return %c0_i32, %c0_i32_0, %c0_i32_1 : i32, i32, i32
  }
  func.func @transform_2(%arg0: i32) -> (i32, i32, i32) {
    %c0_i32 = arith.constant 0 : i32
    %c0_i32_0 = arith.constant 0 : i32
    %c0_i32_1 = arith.constant 0 : i32
    %c0_i32_2 = arith.constant 0 : i32
    return %c0_i32, %c0_i32_0, %c0_i32_1 : i32, i32, i32
  }
  func.func @transform_3(%arg0: i32) -> (i32, i32) {
    %c0_i32 = arith.constant 0 : i32
    %c0_i32_0 = arith.constant 0 : i32
    return %arg0, %c0_i32 : i32, i32
  }
  func.func @transform_4(%arg0: i32) -> (i32, i32) {
    %c0_i32 = arith.constant 0 : i32
    %c0_i32_0 = arith.constant 0 : i32
    return %arg0, %c0_i32 : i32, i32
  }
}

</mosaic_0001>

<llo_original>
// kernel: rnn_wm_forward.1
$region0: #{rnn_wm_forward.1}
  #allocation0 [shape = 'u32[]', space=smem, size = 0x4, offset = 0x4, fixed_abs, tag = 'smem constant byte address 0x4 - core index']
  #allocation1 [shape = 'u32[144,128]{1,0:T(1,128)}', space=vmem, size = 0x12000, scoped, tag = 'internal scratch']
  %s0 = inlined_call_operand.vmem [shape: u8[32,128], index: 0, kind: input, shape index: {}]
  %s1 = inlined_call_operand.hbm [shape: bf16[6,128,128], index: 1, kind: input, shape index: {}]
  %s2 = inlined_call_operand.vmem [shape: bf16[6,1,128], index: 2, kind: input, shape index: {}]
  %s3 = inlined_call_operand.vmem [shape: bf16[32,128], index: 3, kind: output, shape index: {0}]
  %s4 = inlined_call_operand.vmem [shape: f32[8,128], index: 4, kind: output, shape index: {1}]
  %5 = xla_tuple %s3, %s4
  %s6 = sld [smem:[#allocation0]]
  $region42: #{rnn_wm_forward.1} parent=0
    _
  %s8 = ssub.s32 1, %s6
  %s9 = scalar_select 0, %s8, %s6
  $region1: #{rnn_wm_forward.1} parent=0
    #allocation2 [shape = 'u8[196608]{0}', space=vmem, size = 0x30000, scoped, tag = 'input window, operand 1, single buffered']
    #allocation3 [shape = 's32[1]{0}', space=sflag, size = 0x4, scoped, tag = 'scoped memory for rnn_wm_forward.1']
    %10 = vsyncpa [#allocation3], 0
    // Predicated region
    $region2: #{rnn_wm_forward.1} parent=1 // pred_check
      _
    $region3: #{rnn_wm_forward.1} parent=1 // pred_check_branch
      %12 = sbr.rel (0) target = $region5
    $region4: #{rnn_wm_forward.1} parent=1 // pred_region
      _
    $region5: #{rnn_wm_forward.1} parent=1 // pred_fallthru
      _
    // Predicated region
    $region6: #{rnn_wm_forward.1} parent=1 // pred_check
      _
    $region7: #{rnn_wm_forward.1} parent=1 // pred_check_branch
      %14 = sbr.rel (0) target = $region9
    $region8: #{rnn_wm_forward.1} parent=1 // pred_region
      %s16 = ssub.s32 6144, 6144
      %17 = vsyncadd [#allocation3], %s16
      %s18 = sshll.u32 [#allocation2], 4
      %s19 = int_to_ptr.vmem [resolvable:$true] %s18
      %24 = dma.hbm_to_vmem [thread:$0]  %s1, 6144, %s19, [#allocation3], 64, 64, 4
    $region9: #{rnn_wm_forward.1} parent=1 // pred_fallthru
      _
    // Predicated region
    $region10: #{rnn_wm_forward.1} parent=1 // pred_check
      _
    $region11: #{rnn_wm_forward.1} parent=1 // pred_check_branch
      %26 = sbr.rel (0) target = $region13
    $region12: #{rnn_wm_forward.1} parent=1 // pred_region
      _
    $region13: #{rnn_wm_forward.1} parent=1 // pred_fallthru
      _
    // Predicated region
    $region14: #{rnn_wm_forward.1} parent=1 // pred_check
      _
    $region15: #{rnn_wm_forward.1} parent=1 // pred_check_branch
      %28 = sbr.rel (0) target = $region17
    $region16: #{rnn_wm_forward.1} parent=1 // pred_region
      %29 = dma.done [#allocation3], 6144
    $region17: #{rnn_wm_forward.1} parent=1 // pred_fallthru
      _
    %v31 = vld [vmem:[%s0] sm:$0xff]
    %v32 = vunpack.c.0.s8 %v31
    %v33 = vunpack.c.1.s8 %v31
    %v34 = vunpack.c.2.s8 %v31
    %v35 = vunpack.c.3.s8 %v31
    %v36 = vand.u32 %v32, 255
    %v37 = vand.u32 %v33, 255
    %v38 = vand.u32 %v34, 255
    %v39 = vand.u32 %v35, 255
    %v40 = vcvt.s32.f32 %v36
    %v41 = vcvt.s32.f32 %v37
    %v42 = vcvt.s32.f32 %v38
    %v43 = vcvt.s32.f32 %v39
    %v44 = vmul.f32 %v40, 0.003921569
    %v45 = vmul.f32 %v41, 0.003921569
    %v46 = vmul.f32 %v42, 0.003921569
    %v47 = vmul.f32 %v43, 0.003921569
    %v48 = vpack.c.bf16 %v45, %v44
    %v49 = vpack.c.bf16 %v47, %v46
    %v50 = vld [vmem:[#allocation2] sm:$0xf]
    %v51 = vld [vmem:[#allocation2 + $0x4] sm:$0xf]
    %v52 = vld [vmem:[#allocation2 + $0x8] sm:$0xf]
    %v53 = vld [vmem:[#allocation2 + $0xc] sm:$0xf]
    %v54 = vld [vmem:[#allocation2 + $0x10] sm:$0xf]
    %v55 = vld [vmem:[#allocation2 + $0x14] sm:$0xf]
    %v56 = vld [vmem:[#allocation2 + $0x18] sm:$0xf]
    %v57 = vld [vmem:[#allocation2 + $0x1c] sm:$0xf]
    %v58 = vld [vmem:[#allocation2 + $0x20] sm:$0xf]
    %v59 = vld [vmem:[#allocation2 + $0x24] sm:$0xf]
    %v60 = vld [vmem:[#allocation2 + $0x28] sm:$0xf]
    %v61 = vld [vmem:[#allocation2 + $0x2c] sm:$0xf]
    %v62 = vld [vmem:[#allocation2 + $0x30] sm:$0xf]
    %v63 = vld [vmem:[#allocation2 + $0x34] sm:$0xf]
    %v64 = vld [vmem:[#allocation2 + $0x38] sm:$0xf]
    %v65 = vld [vmem:[#allocation2 + $0x3c] sm:$0xf]
    %v66 = vld [vmem:[%s2] sm:$0x1]
    %v67 = vunpack.c.l.bf16 %v66
    %v68 = vlaneseq
    %v69 = vshrl.u32 %v68, 7
    %v70 = vsub.s32 0, %v69
    %v71 = vrot.slane %v67, %v70
    %v88 = vunpack.c.l.b16 %v50
    %v89 = vunpack.c.l.b16 %v51
    %v90 = vunpack.c.l.b16 %v52
    %v91 = vunpack.c.l.b16 %v53
    %v92 = vunpack.c.l.b16 %v54
    %v93 = vunpack.c.l.b16 %v55
    %v94 = vunpack.c.l.b16 %v56
    %v95 = vunpack.c.l.b16 %v57
    %v96 = vunpack.c.l.b16 %v58
    %v97 = vunpack.c.l.b16 %v59
    %v98 = vunpack.c.l.b16 %v60
    %v99 = vunpack.c.l.b16 %v61
    %v100 = vunpack.c.l.b16 %v62
    %v101 = vunpack.c.l.b16 %v63
    %v102 = vunpack.c.l.b16 %v64
    %v103 = vunpack.c.l.b16 %v65
    %v104 = vpack.c.b16 %v89, %v88
    %v105 = vpack.c.b16 %v91, %v90
    %v106 = vpack.c.b16 %v93, %v92
    %v107 = vpack.c.b16 %v95, %v94
    %v108 = vpack.c.b16 %v97, %v96
    %v109 = vpack.c.b16 %v99, %v98
    %v110 = vpack.c.b16 %v101, %v100
    %v111 = vpack.c.b16 %v103, %v102
    %120 = vmatprep.subr.bf16.mxu0 0
    %121 = vmatpush1.bf16.msra.mxu0 %v111
    %122 = vmatprep.subr.bf16.mxu0 0
    %123 = vmatpush1.bf16.msra.mxu0 %v110
    %124 = vmatprep.subr.bf16.mxu0 0
    %125 = vmatpush1.bf16.msra.mxu0 %v109
    %126 = vmatprep.subr.bf16.mxu0 0
    %127 = vmatpush1.bf16.msra.mxu0 %v108
    %128 = vmatprep.subr.bf16.mxu0 0
    %129 = vmatpush1.bf16.msra.mxu0 %v107
    %130 = vmatprep.subr.bf16.mxu0 0
    %131 = vmatpush1.bf16.msra.mxu0 %v106
    %132 = vmatprep.subr.bf16.mxu0 0
    %133 = vmatpush1.bf16.msra.mxu0 %v105
    %134 = vmatprep.subr.bf16.mxu0 0
    %135 = vmatpush1.bf16.msra.mxu0 %v104
    %136 = vmatprep.subr.bf16.mxu0 0
    %137 = vmatpush2.bf16.msra.mxu0 0
    %138 = vmatprep.subr.bf16.mxu0 0
    %139 = vmatpush2.bf16.msra.mxu0 0
    %140 = vmatprep.subr.bf16.mxu0 0
    %141 = vmatpush2.bf16.msra.mxu0 0
    %142 = vmatprep.subr.bf16.mxu0 0
    %143 = vmatpush2.bf16.msra.mxu0 0
    %144 = vmatprep.subr.bf16.mxu0 0
    %145 = vmatpush2.bf16.msra.mxu0 0
    %146 = vmatprep.subr.bf16.mxu0 0
    %147 = vmatpush2.bf16.msra.mxu0 0
    %148 = vmatprep.subr.bf16.mxu0 0
    %149 = vmatpush2.bf16.msra.mxu0 0
    %150 = vmatprep.subr.bf16.mxu0 0
    %151 = vmatpush2.bf16.msra.mxu0 0
    %152 = vmatprep.mubr.bf16.mxu0 0
    %153 = vmatmul.mubr.bf16.gmra.mxu0 %v48
    %v154 = vpop.f32.mrf.mxu0
    %v155 = vadd.f32 %v71, %v154
    %v156 = vpop.f32.mrf.mxu0
    %v157 = vpop.f32.mrf.mxu0
    %v158 = vadd.f32 %v71, %v157
    %v159 = vpop.f32.mrf.mxu0
    %160 = vmatprep.mubr.bf16.mxu0 0
    %161 = vmatmul.mubr.bf16.gmra.mxu0 %v49
    %v162 = vpop.f32.mrf.mxu0
    %v163 = vadd.f32 %v71, %v162
    %v164 = vpop.f32.mrf.mxu0
    %v165 = vpop.f32.mrf.mxu0
    %v166 = vadd.f32 %v71, %v165
    %v167 = vpop.f32.mrf.mxu0
    %168 = vdwg.mxu0
    %v169 = vmax.f32 %v155, 0.0
    %v170 = vmax.f32 %v158, 0.0
    %v171 = vmax.f32 %v163, 0.0
    %v172 = vmax.f32 %v166, 0.0
    %v173 = vpack.c.bf16 %v170, %v169
    %v174 = vpack.c.bf16 %v172, %v171
    %s175 = scalar_lea.vmem [#allocation2], 64
    %v176 = vld [vmem:[%s175] sm:$0xf]
    %v177 = vld [vmem:[%s175 + $0x4] sm:$0xf]
    %v178 = vld [vmem:[%s175 + $0x8] sm:$0xf]
    %v179 = vld [vmem:[%s175 + $0xc] sm:$0xf]
    %v180 = vld [vmem:[%s175 + $0x10] sm:$0xf]
    %v181 = vld [vmem:[%s175 + $0x14] sm:$0xf]
    %v182 = vld [vmem:[%s175 + $0x18] sm:$0xf]
    %v183 = vld [vmem:[%s175 + $0x1c] sm:$0xf]
    %v184 = vld [vmem:[%s175 + $0x20] sm:$0xf]
    %v185 = vld [vmem:[%s175 + $0x24] sm:$0xf]
    %v186 = vld [vmem:[%s175 + $0x28] sm:$0xf]
    %v187 = vld [vmem:[%s175 + $0x2c] sm:$0xf]
    %v188 = vld [vmem:[%s175 + $0x30] sm:$0xf]
    %v189 = vld [vmem:[%s175 + $0x34] sm:$0xf]
    %v190 = vld [vmem:[%s175 + $0x38] sm:$0xf]
    %v191 = vld [vmem:[%s175 + $0x3c] sm:$0xf]
    %s192 = scalar_lea.vmem %s2, 1
    %v193 = vld [vmem:[%s192] sm:$0x1]
    %v194 = vunpack.c.l.bf16 %v193
    %v195 = vlaneseq
    %v196 = vshrl.u32 %v195, 7
    %v197 = vsub.s32 0, %v196
    %v198 = vrot.slane %v194, %v197
    %v215 = vunpack.c.l.b16 %v176
    %v216 = vunpack.c.l.b16 %v177
    %v217 = vunpack.c.l.b16 %v178
    %v218 = vunpack.c.l.b16 %v179
    %v219 = vunpack.c.l.b16 %v180
    %v220 = vunpack.c.l.b16 %v181
    %v221 = vunpack.c.l.b16 %v182
    %v222 = vunpack.c.l.b16 %v183
    %v223 = vunpack.c.l.b16 %v184
    %v224 = vunpack.c.l.b16 %v185
    %v225 = vunpack.c.l.b16 %v186
    %v226 = vunpack.c.l.b16 %v187
    %v227 = vunpack.c.l.b16 %v188
    %v228 = vunpack.c.l.b16 %v189
    %v229 = vunpack.c.l.b16 %v190
    %v230 = vunpack.c.l.b16 %v191
    %v231 = vpack.c.b16 %v216, %v215
    %v232 = vpack.c.b16 %v218, %v217
    %v233 = vpack.c.b16 %v220, %v219
    %v234 = vpack.c.b16 %v222, %v221
    %v235 = vpack.c.b16 %v224, %v223
    %v236 = vpack.c.b16 %v226, %v225
    %v237 = vpack.c.b16 %v228, %v227
    %v238 = vpack.c.b16 %v230, %v229
    %247 = vmatprep.subr.bf16.mxu0 0
    %248 = vmatpush1.bf16.msra.mxu0 %v238
    %249 = vmatprep.subr.bf16.mxu0 0
    %250 = vmatpush1.bf16.msra.mxu0 %v237
    %251 = vmatprep.subr.bf16.mxu0 0
    %252 = vmatpush1.bf16.msra.mxu0 %v236
    %253 = vmatprep.subr.bf16.mxu0 0
    %254 = vmatpush1.bf16.msra.mxu0 %v235
    %255 = vmatprep.subr.bf16.mxu0 0
    %256 = vmatpush1.bf16.msra.mxu0 %v234
    %257 = vmatprep.subr.bf16.mxu0 0
    %258 = vmatpush1.bf16.msra.mxu0 %v233
    %259 = vmatprep.subr.bf16.mxu0 0
    %260 = vmatpush1.bf16.msra.mxu0 %v232
    %261 = vmatprep.subr.bf16.mxu0 0
    %262 = vmatpush1.bf16.msra.mxu0 %v231
    %263 = vmatprep.subr.bf16.mxu0 0
    %264 = vmatpush2.bf16.msra.mxu0 0
    %265 = vmatprep.subr.bf16.mxu0 0
    %266 = vmatpush2.bf16.msra.mxu0 0
    %267 = vmatprep.subr.bf16.mxu0 0
    %268 = vmatpush2.bf16.msra.mxu0 0
    %269 = vmatprep.subr.bf16.mxu0 0
    %270 = vmatpush2.bf16.msra.mxu0 0
    %271 = vmatprep.subr.bf16.mxu0 0
    %272 = vmatpush2.bf16.msra.mxu0 0
    %273 = vmatprep.subr.bf16.mxu0 0
    %274 = vmatpush2.bf16.msra.mxu0 0
    %275 = vmatprep.subr.bf16.mxu0 0
    %276 = vmatpush2.bf16.msra.mxu0 0
    %277 = vmatprep.subr.bf16.mxu0 0
    %278 = vmatpush2.bf16.msra.mxu0 0
    %279 = vmatprep.mubr.bf16.mxu0 0
    %280 = vmatmul.mubr.bf16.gmra.mxu0 %v173
    %v281 = vpop.f32.mrf.mxu0
    %v282 = vadd.f32 %v198, %v281
    %v283 = vpop.f32.mrf.mxu0
    %v284 = vpop.f32.mrf.mxu0
    %v285 = vadd.f32 %v198, %v284
    %v286 = vpop.f32.mrf.mxu0
    %287 = vmatprep.mubr.bf16.mxu0 0
    %288 = vmatmul.mubr.bf16.gmra.mxu0 %v174
    %v289 = vpop.f32.mrf.mxu0
    %v290 = vadd.f32 %v198, %v289
    %v291 = vpop.f32.mrf.mxu0
    %v292 = vpop.f32.mrf.mxu0
    %v293 = vadd.f32 %v198, %v292
    %v294 = vpop.f32.mrf.mxu0
    %295 = vdwg.mxu0
    %v296 = vmax.f32 %v282, 0.0
    %v297 = vmax.f32 %v285, 0.0
    %v298 = vmax.f32 %v290, 0.0
    %v299 = vmax.f32 %v293, 0.0
    %v300 = vpack.c.bf16 %v297, %v296
    %v301 = vpack.c.bf16 %v299, %v298
    %s302 = scalar_lea.vmem [#allocation2], 128
    %v303 = vld [vmem:[%s302] sm:$0xf]
    %v304 = vld [vmem:[%s302 + $0x4] sm:$0xf]
    %v305 = vld [vmem:[%s302 + $0x8] sm:$0xf]
    %v306 = vld [vmem:[%s302 + $0xc] sm:$0xf]
    %v307 = vld [vmem:[%s302 + $0x10] sm:$0xf]
    %v308 = vld [vmem:[%s302 + $0x14] sm:$0xf]
    %v309 = vld [vmem:[%s302 + $0x18] sm:$0xf]
    %v310 = vld [vmem:[%s302 + $0x1c] sm:$0xf]
    %v311 = vld [vmem:[%s302 + $0x20] sm:$0xf]
    %v312 = vld [vmem:[%s302 + $0x24] sm:$0xf]
    %v313 = vld [vmem:[%s302 + $0x28] sm:$0xf]
    %v314 = vld [vmem:[%s302 + $0x2c] sm:$0xf]
    %v315 = vld [vmem:[%s302 + $0x30] sm:$0xf]
    %v316 = vld [vmem:[%s302 + $0x34] sm:$0xf]
    %v317 = vld [vmem:[%s302 + $0x38] sm:$0xf]
    %v318 = vld [vmem:[%s302 + $0x3c] sm:$0xf]
    %s319 = scalar_lea.vmem %s2, 2
    %v320 = vld [vmem:[%s319] sm:$0x1]
    %v321 = vunpack.c.l.bf16 %v320
    %v322 = vlaneseq
    %v323 = vshrl.u32 %v322, 7
    %v324 = vsub.s32 0, %v323
    %v325 = vrot.slane %v321, %v324
    %v342 = vunpack.c.l.b16 %v303
    %v343 = vunpack.c.l.b16 %v304
    %v344 = vunpack.c.l.b16 %v305
    %v345 = vunpack.c.l.b16 %v306
    %v346 = vunpack.c.l.b16 %v307
    %v347 = vunpack.c.l.b16 %v308
    %v348 = vunpack.c.l.b16 %v309
    %v349 = vunpack.c.l.b16 %v310
    %v350 = vunpack.c.l.b16 %v311
    %v351 = vunpack.c.l.b16 %v312
    %v352 = vunpack.c.l.b16 %v313
    %v353 = vunpack.c.l.b16 %v314
    %v354 = vunpack.c.l.b16 %v315
    %v355 = vunpack.c.l.b16 %v316
    %v356 = vunpack.c.l.b16 %v317
    %v357 = vunpack.c.l.b16 %v318
    %v358 = vpack.c.b16 %v343, %v342
    %v359 = vpack.c.b16 %v345, %v344
    %v360 = vpack.c.b16 %v347, %v346
    %v361 = vpack.c.b16 %v349, %v348
    %v362 = vpack.c.b16 %v351, %v350
    %v363 = vpack.c.b16 %v353, %v352
    %v364 = vpack.c.b16 %v355, %v354
    %v365 = vpack.c.b16 %v357, %v356
    %374 = vmatprep.subr.bf16.mxu0 0
    %375 = vmatpush1.bf16.msra.mxu0 %v365
    %376 = vmatprep.subr.bf16.mxu0 0
    %377 = vmatpush1.bf16.msra.mxu0 %v364
    %378 = vmatprep.subr.bf16.mxu0 0
    %379 = vmatpush1.bf16.msra.mxu0 %v363
    %380 = vmatprep.subr.bf16.mxu0 0
    %381 = vmatpush1.bf16.msra.mxu0 %v362
    %382 = vmatprep.subr.bf16.mxu0 0
    %383 = vmatpush1.bf16.msra.mxu0 %v361
    %384 = vmatprep.subr.bf16.mxu0 0
    %385 = vmatpush1.bf16.msra.mxu0 %v360
    %386 = vmatprep.subr.bf16.mxu0 0
    %387 = vmatpush1.bf16.msra.mxu0 %v359
    %388 = vmatprep.subr.bf16.mxu0 0
    %389 = vmatpush1.bf16.msra.mxu0 %v358
    %390 = vmatprep.subr.bf16.mxu0 0
    %391 = vmatpush2.bf16.msra.mxu0 0
    %392 = vmatprep.subr.bf16.mxu0 0
    %393 = vmatpush2.bf16.msra.mxu0 0
    %394 = vmatprep.subr.bf16.mxu0 0
    %395 = vmatpush2.bf16.msra.mxu0 0
    %396 = vmatprep.subr.bf16.mxu0 0
    %397 = vmatpush2.bf16.msra.mxu0 0
    %398 = vmatprep.subr.bf16.mxu0 0
    %399 = vmatpush2.bf16.msra.mxu0 0
    %400 = vmatprep.subr.bf16.mxu0 0
    %401 = vmatpush2.bf16.msra.mxu0 0
    %402 = vmatprep.subr.bf16.mxu0 0
    %403 = vmatpush2.bf16.msra.mxu0 0
    %404 = vmatprep.subr.bf16.mxu0 0
    %405 = vmatpush2.bf16.msra.mxu0 0
    %406 = vmatprep.mubr.bf16.mxu0 0
    %407 = vmatmul.mubr.bf16.gmra.mxu0 %v300
    %v408 = vpop.f32.mrf.mxu0
    %v409 = vadd.f32 %v325, %v408
    %v410 = vpop.f32.mrf.mxu0
    %v411 = vpop.f32.mrf.mxu0
    %v412 = vadd.f32 %v325, %v411
    %v413 = vpop.f32.mrf.mxu0
    %414 = vmatprep.mubr.bf16.mxu0 0
    %415 = vmatmul.mubr.bf16.gmra.mxu0 %v301
    %v416 = vpop.f32.mrf.mxu0
    %v417 = vadd.f32 %v325, %v416
    %v418 = vpop.f32.mrf.mxu0
    %v419 = vpop.f32.mrf.mxu0
    %v420 = vadd.f32 %v325, %v419
    %v421 = vpop.f32.mrf.mxu0
    %422 = vdwg.mxu0
    %v423 = vmax.f32 %v409, 0.0
    %v424 = vmax.f32 %v412, 0.0
    %v425 = vmax.f32 %v417, 0.0
    %v426 = vmax.f32 %v420, 0.0
    %v427 = vpack.c.bf16 %v424, %v423
    %v428 = vpack.c.bf16 %v426, %v425
    %v431 = vunpack.c.l.b16 %v427
    %v432 = vunpack.c.h.b16 %v427
    %v433 = vunpack.c.l.b16 %v428
    %v434 = vunpack.c.h.b16 %v428
    %v435 = vpack.c.b16 %v431, %v431
    %v436 = vpack.c.b16 %v432, %v432
    %v437 = vpack.c.b16 %v433, %v433
    %v438 = vpack.c.b16 %v434, %v434
    %443 = vst [vmem:[%s3] sm:$0xf] %v435
    %444 = vst [vmem:[%s3 + $0x4] sm:$0xf] %v436
    %445 = vst [vmem:[%s3 + $0x8] sm:$0xf] %v437
    %446 = vst [vmem:[%s3 + $0xc] sm:$0xf] %v438
    %s447 = scalar_lea.vmem [#allocation2], 192
    %v448 = vld [vmem:[%s447] sm:$0xf]
    %v449 = vld [vmem:[%s447 + $0x4] sm:$0xf]
    %v450 = vld [vmem:[%s447 + $0x8] sm:$0xf]
    %v451 = vld [vmem:[%s447 + $0xc] sm:$0xf]
    %v452 = vld [vmem:[%s447 + $0x10] sm:$0xf]
    %v453 = vld [vmem:[%s447 + $0x14] sm:$0xf]
    %v454 = vld [vmem:[%s447 + $0x18] sm:$0xf]
    %v455 = vld [vmem:[%s447 + $0x1c] sm:$0xf]
    %v456 = vld [vmem:[%s447 + $0x20] sm:$0xf]
    %v457 = vld [vmem:[%s447 + $0x24] sm:$0xf]
    %v458 = vld [vmem:[%s447 + $0x28] sm:$0xf]
    %v459 = vld [vmem:[%s447 + $0x2c] sm:$0xf]
    %v460 = vld [vmem:[%s447 + $0x30] sm:$0xf]
    %v461 = vld [vmem:[%s447 + $0x34] sm:$0xf]
    %v462 = vld [vmem:[%s447 + $0x38] sm:$0xf]
    %v463 = vld [vmem:[%s447 + $0x3c] sm:$0xf]
    %s464 = scalar_lea.vmem %s2, 3
    %v465 = vld [vmem:[%s464] sm:$0x1]
    %v466 = vunpack.c.l.bf16 %v465
    %v467 = vlaneseq
    %v468 = vshrl.u32 %v467, 7
    %v469 = vsub.s32 0, %v468
    %v470 = vrot.slane %v466, %v469
    %v487 = vunpack.c.l.b16 %v448
    %v488 = vunpack.c.l.b16 %v449
    %v489 = vunpack.c.l.b16 %v450
    %v490 = vunpack.c.l.b16 %v451
    %v491 = vunpack.c.l.b16 %v452
    %v492 = vunpack.c.l.b16 %v453
    %v493 = vunpack.c.l.b16 %v454
    %v494 = vunpack.c.l.b16 %v455
    %v495 = vunpack.c.l.b16 %v456
    %v496 = vunpack.c.l.b16 %v457
    %v497 = vunpack.c.l.b16 %v458
    %v498 = vunpack.c.l.b16 %v459
    %v499 = vunpack.c.l.b16 %v460
    %v500 = vunpack.c.l.b16 %v461
    %v501 = vunpack.c.l.b16 %v462
    %v502 = vunpack.c.l.b16 %v463
    %v503 = vpack.c.b16 %v488, %v487
    %v504 = vpack.c.b16 %v490, %v489
    %v505 = vpack.c.b16 %v492, %v491
    %v506 = vpack.c.b16 %v494, %v493
    %v507 = vpack.c.b16 %v496, %v495
    %v508 = vpack.c.b16 %v498, %v497
    %v509 = vpack.c.b16 %v500, %v499
    %v510 = vpack.c.b16 %v502, %v501
    %519 = vmatprep.subr.bf16.mxu0 0
    %520 = vmatpush1.bf16.msra.mxu0 %v510
    %521 = vmatprep.subr.bf16.mxu0 0
    %522 = vmatpush1.bf16.msra.mxu0 %v509
    %523 = vmatprep.subr.bf16.mxu0 0
    %524 = vmatpush1.bf16.msra.mxu0 %v508
    %525 = vmatprep.subr.bf16.mxu0 0
    %526 = vmatpush1.bf16.msra.mxu0 %v507
    %527 = vmatprep.subr.bf16.mxu0 0
    %528 = vmatpush1.bf16.msra.mxu0 %v506
    %529 = vmatprep.subr.bf16.mxu0 0
    %530 = vmatpush1.bf16.msra.mxu0 %v505
    %531 = vmatprep.subr.bf16.mxu0 0
    %532 = vmatpush1.bf16.msra.mxu0 %v504
    %533 = vmatprep.subr.bf16.mxu0 0
    %534 = vmatpush1.bf16.msra.mxu0 %v503
    %535 = vmatprep.subr.bf16.mxu0 0
    %536 = vmatpush2.bf16.msra.mxu0 0
    %537 = vmatprep.subr.bf16.mxu0 0
    %538 = vmatpush2.bf16.msra.mxu0 0
    %539 = vmatprep.subr.bf16.mxu0 0
    %540 = vmatpush2.bf16.msra.mxu0 0
    %541 = vmatprep.subr.bf16.mxu0 0
    %542 = vmatpush2.bf16.msra.mxu0 0
    %543 = vmatprep.subr.bf16.mxu0 0
    %544 = vmatpush2.bf16.msra.mxu0 0
    %545 = vmatprep.subr.bf16.mxu0 0
    %546 = vmatpush2.bf16.msra.mxu0 0
    %547 = vmatprep.subr.bf16.mxu0 0
    %548 = vmatpush2.bf16.msra.mxu0 0
    %549 = vmatprep.subr.bf16.mxu0 0
    %550 = vmatpush2.bf16.msra.mxu0 0
    %551 = vmatprep.mubr.bf16.mxu0 0
    %552 = vmatmul.mubr.bf16.gmra.mxu0 %v427
    %v553 = vpop.f32.mrf.mxu0
    %v554 = vadd.f32 %v470, %v553
    %v555 = vpop.f32.mrf.mxu0
    %v556 = vpop.f32.mrf.mxu0
    %v557 = vadd.f32 %v470, %v556
    %v558 = vpop.f32.mrf.mxu0
    %559 = vmatprep.mubr.bf16.mxu0 0
    %560 = vmatmul.mubr.bf16.gmra.mxu0 %v428
    %v561 = vpop.f32.mrf.mxu0
    %v562 = vadd.f32 %v470, %v561
    %v563 = vpop.f32.mrf.mxu0
    %v564 = vpop.f32.mrf.mxu0
    %v565 = vadd.f32 %v470, %v564
    %v566 = vpop.f32.mrf.mxu0
    %567 = vdwg.mxu0
    %v568 = vmax.f32 %v554, 0.0
    %v569 = vmax.f32 %v557, 0.0
    %v570 = vmax.f32 %v562, 0.0
    %v571 = vmax.f32 %v565, 0.0
    %v572 = vpack.c.bf16 %v569, %v568
    %v573 = vpack.c.bf16 %v571, %v570
    %s574 = scalar_lea.vmem [#allocation2], 256
    %v575 = vld [vmem:[%s574] sm:$0xf]
    %v576 = vld [vmem:[%s574 + $0x4] sm:$0xf]
    %v577 = vld [vmem:[%s574 + $0x8] sm:$0xf]
    %v578 = vld [vmem:[%s574 + $0xc] sm:$0xf]
    %v579 = vld [vmem:[%s574 + $0x10] sm:$0xf]
    %v580 = vld [vmem:[%s574 + $0x14] sm:$0xf]
    %v581 = vld [vmem:[%s574 + $0x18] sm:$0xf]
    %v582 = vld [vmem:[%s574 + $0x1c] sm:$0xf]
    %v583 = vld [vmem:[%s574 + $0x20] sm:$0xf]
    %v584 = vld [vmem:[%s574 + $0x24] sm:$0xf]
    %v585 = vld [vmem:[%s574 + $0x28] sm:$0xf]
    %v586 = vld [vmem:[%s574 + $0x2c] sm:$0xf]
    %v587 = vld [vmem:[%s574 + $0x30] sm:$0xf]
    %v588 = vld [vmem:[%s574 + $0x34] sm:$0xf]
    %v589 = vld [vmem:[%s574 + $0x38] sm:$0xf]
    %v590 = vld [vmem:[%s574 + $0x3c] sm:$0xf]
    %s591 = scalar_lea.vmem %s2, 4
    %v592 = vld [vmem:[%s591] sm:$0x1]
    %v593 = vunpack.c.l.bf16 %v592
    %v594 = vlaneseq
    %v595 = vshrl.u32 %v594, 7
    %v596 = vsub.s32 0, %v595
    %v597 = vrot.slane %v593, %v596
    %v614 = vunpack.c.l.b16 %v575
    %v615 = vunpack.c.l.b16 %v576
    %v616 = vunpack.c.l.b16 %v577
    %v617 = vunpack.c.l.b16 %v578
    %v618 = vunpack.c.l.b16 %v579
    %v619 = vunpack.c.l.b16 %v580
    %v620 = vunpack.c.l.b16 %v581
    %v621 = vunpack.c.l.b16 %v582
    %v622 = vunpack.c.l.b16 %v583
    %v623 = vunpack.c.l.b16 %v584
    %v624 = vunpack.c.l.b16 %v585
    %v625 = vunpack.c.l.b16 %v586
    %v626 = vunpack.c.l.b16 %v587
    %v627 = vunpack.c.l.b16 %v588
    %v628 = vunpack.c.l.b16 %v589
    %v629 = vunpack.c.l.b16 %v590
    %v630 = vpack.c.b16 %v615, %v614
    %v631 = vpack.c.b16 %v617, %v616
    %v632 = vpack.c.b16 %v619, %v618
    %v633 = vpack.c.b16 %v621, %v620
    %v634 = vpack.c.b16 %v623, %v622
    %v635 = vpack.c.b16 %v625, %v624
    %v636 = vpack.c.b16 %v627, %v626
    %v637 = vpack.c.b16 %v629, %v628
    %646 = vmatprep.subr.bf16.mxu0 0
    %647 = vmatpush1.bf16.msra.mxu0 %v637
    %648 = vmatprep.subr.bf16.mxu0 0
    %649 = vmatpush1.bf16.msra.mxu0 %v636
    %650 = vmatprep.subr.bf16.mxu0 0
    %651 = vmatpush1.bf16.msra.mxu0 %v635
    %652 = vmatprep.subr.bf16.mxu0 0
    %653 = vmatpush1.bf16.msra.mxu0 %v634
    %654 = vmatprep.subr.bf16.mxu0 0
    %655 = vmatpush1.bf16.msra.mxu0 %v633
    %656 = vmatprep.subr.bf16.mxu0 0
    %657 = vmatpush1.bf16.msra.mxu0 %v632
    %658 = vmatprep.subr.bf16.mxu0 0
    %659 = vmatpush1.bf16.msra.mxu0 %v631
    %660 = vmatprep.subr.bf16.mxu0 0
    %661 = vmatpush1.bf16.msra.mxu0 %v630
    %662 = vmatprep.subr.bf16.mxu0 0
    %663 = vmatpush2.bf16.msra.mxu0 0
    %664 = vmatprep.subr.bf16.mxu0 0
    %665 = vmatpush2.bf16.msra.mxu0 0
    %666 = vmatprep.subr.bf16.mxu0 0
    %667 = vmatpush2.bf16.msra.mxu0 0
    %668 = vmatprep.subr.bf16.mxu0 0
    %669 = vmatpush2.bf16.msra.mxu0 0
    %670 = vmatprep.subr.bf16.mxu0 0
    %671 = vmatpush2.bf16.msra.mxu0 0
    %672 = vmatprep.subr.bf16.mxu0 0
    %673 = vmatpush2.bf16.msra.mxu0 0
    %674 = vmatprep.subr.bf16.mxu0 0
    %675 = vmatpush2.bf16.msra.mxu0 0
    %676 = vmatprep.subr.bf16.mxu0 0
    %677 = vmatpush2.bf16.msra.mxu0 0
    %678 = vmatprep.mubr.bf16.mxu0 0
    %679 = vmatmul.mubr.bf16.gmra.mxu0 %v572
    %v680 = vpop.f32.mrf.mxu0
    %v681 = vadd.f32 %v597, %v680
    %v682 = vpop.f32.mrf.mxu0
    %v683 = vpop.f32.mrf.mxu0
    %v684 = vadd.f32 %v597, %v683
    %v685 = vpop.f32.mrf.mxu0
    %686 = vmatprep.mubr.bf16.mxu0 0
    %687 = vmatmul.mubr.bf16.gmra.mxu0 %v573
    %v688 = vpop.f32.mrf.mxu0
    %v689 = vadd.f32 %v597, %v688
    %v690 = vpop.f32.mrf.mxu0
    %v691 = vpop.f32.mrf.mxu0
    %v692 = vadd.f32 %v597, %v691
    %v693 = vpop.f32.mrf.mxu0
    %694 = vdwg.mxu0
    %v695 = vmax.f32 %v681, 0.0
    %v696 = vmax.f32 %v684, 0.0
    %v697 = vmax.f32 %v689, 0.0
    %v698 = vmax.f32 %v692, 0.0
    %v699 = vpack.c.bf16 %v696, %v695
    %v700 = vpack.c.bf16 %v698, %v697
    %s701 = scalar_lea.vmem [#allocation2], 320
    %v702 = vld [vmem:[%s701] sm:$0xf]
    %v703 = vld [vmem:[%s701 + $0x4] sm:$0xf]
    %v704 = vld [vmem:[%s701 + $0x8] sm:$0xf]
    %v705 = vld [vmem:[%s701 + $0xc] sm:$0xf]
    %v706 = vld [vmem:[%s701 + $0x10] sm:$0xf]
    %v707 = vld [vmem:[%s701 + $0x14] sm:$0xf]
    %v708 = vld [vmem:[%s701 + $0x18] sm:$0xf]
    %v709 = vld [vmem:[%s701 + $0x1c] sm:$0xf]
    %v710 = vld [vmem:[%s701 + $0x20] sm:$0xf]
    %v711 = vld [vmem:[%s701 + $0x24] sm:$0xf]
    %v712 = vld [vmem:[%s701 + $0x28] sm:$0xf]
    %v713 = vld [vmem:[%s701 + $0x2c] sm:$0xf]
    %v714 = vld [vmem:[%s701 + $0x30] sm:$0xf]
    %v715 = vld [vmem:[%s701 + $0x34] sm:$0xf]
    %v716 = vld [vmem:[%s701 + $0x38] sm:$0xf]
    %v717 = vld [vmem:[%s701 + $0x3c] sm:$0xf]
    %s718 = scalar_lea.vmem %s2, 5
    %v719 = vld [vmem:[%s718] sm:$0x1]
    %v720 = vunpack.c.l.bf16 %v719
    %v721 = vlaneseq
    %v722 = vshrl.u32 %v721, 7
    %v723 = vsub.s32 0, %v722
    %v724 = vrot.slane %v720, %v723
    %v741 = vunpack.c.l.b16 %v702
    %v742 = vunpack.c.l.b16 %v703
    %v743 = vunpack.c.l.b16 %v704
    %v744 = vunpack.c.l.b16 %v705
    %v745 = vunpack.c.l.b16 %v706
    %v746 = vunpack.c.l.b16 %v707
    %v747 = vunpack.c.l.b16 %v708
    %v748 = vunpack.c.l.b16 %v709
    %v749 = vunpack.c.l.b16 %v710
    %v750 = vunpack.c.l.b16 %v711
    %v751 = vunpack.c.l.b16 %v712
    %v752 = vunpack.c.l.b16 %v713
    %v753 = vunpack.c.l.b16 %v714
    %v754 = vunpack.c.l.b16 %v715
    %v755 = vunpack.c.l.b16 %v716
    %v756 = vunpack.c.l.b16 %v717
    %v757 = vpack.c.b16 %v742, %v741
    %v758 = vpack.c.b16 %v744, %v743
    %v759 = vpack.c.b16 %v746, %v745
    %v760 = vpack.c.b16 %v748, %v747
    %v761 = vpack.c.b16 %v750, %v749
    %v762 = vpack.c.b16 %v752, %v751
    %v763 = vpack.c.b16 %v754, %v753
    %v764 = vpack.c.b16 %v756, %v755
    %773 = vmatprep.subr.bf16.mxu0 0
    %774 = vmatpush1.bf16.msra.mxu0 %v764
    %775 = vmatprep.subr.bf16.mxu0 0
    %776 = vmatpush1.bf16.msra.mxu0 %v763
    %777 = vmatprep.subr.bf16.mxu0 0
    %778 = vmatpush1.bf16.msra.mxu0 %v762
    %779 = vmatprep.subr.bf16.mxu0 0
    %780 = vmatpush1.bf16.msra.mxu0 %v761
    %781 = vmatprep.subr.bf16.mxu0 0
    %782 = vmatpush1.bf16.msra.mxu0 %v760
    %783 = vmatprep.subr.bf16.mxu0 0
    %784 = vmatpush1.bf16.msra.mxu0 %v759
    %785 = vmatprep.subr.bf16.mxu0 0
    %786 = vmatpush1.bf16.msra.mxu0 %v758
    %787 = vmatprep.subr.bf16.mxu0 0
    %788 = vmatpush1.bf16.msra.mxu0 %v757
    %789 = vmatprep.subr.bf16.mxu0 0
    %790 = vmatpush2.bf16.msra.mxu0 0
    %791 = vmatprep.subr.bf16.mxu0 0
    %792 = vmatpush2.bf16.msra.mxu0 0
    %793 = vmatprep.subr.bf16.mxu0 0
    %794 = vmatpush2.bf16.msra.mxu0 0
    %795 = vmatprep.subr.bf16.mxu0 0
    %796 = vmatpush2.bf16.msra.mxu0 0
    %797 = vmatprep.subr.bf16.mxu0 0
    %798 = vmatpush2.bf16.msra.mxu0 0
    %799 = vmatprep.subr.bf16.mxu0 0
    %800 = vmatpush2.bf16.msra.mxu0 0
    %801 = vmatprep.subr.bf16.mxu0 0
    %802 = vmatpush2.bf16.msra.mxu0 0
    %803 = vmatprep.subr.bf16.mxu0 0
    %804 = vmatpush2.bf16.msra.mxu0 0
    %805 = vmatprep.mubr.bf16.mxu0 0
    %806 = vmatmul.mubr.bf16.gmra.mxu0 %v699
    %v807 = vpop.f32.mrf.mxu0
    %v808 = vadd.f32 %v724, %v807
    %v809 = vpop.f32.mrf.mxu0
    %v810 = vpop.f32.mrf.mxu0
    %v811 = vadd.f32 %v724, %v810
    %v812 = vpop.f32.mrf.mxu0
    %813 = vmatprep.mubr.bf16.mxu0 0
    %814 = vmatmul.mubr.bf16.gmra.mxu0 %v700
    %v815 = vpop.f32.mrf.mxu0
    %v816 = vadd.f32 %v724, %v815
    %v817 = vpop.f32.mrf.mxu0
    %v818 = vpop.f32.mrf.mxu0
    %v819 = vadd.f32 %v724, %v818
    %v820 = vpop.f32.mrf.mxu0
    %821 = vdwg.mxu0
    %v822 = vsub.f32 %v808, %v44
    %v823 = vsub.f32 %v811, %v45
    %v824 = vsub.f32 %v816, %v46
    %v825 = vsub.f32 %v819, %v47
    %p826 = scmp.ne.s32.totalorder 0, 0
    // Predicated region
    $region18: #{rnn_wm_forward.1} parent=1 // pred_check
      %p827 = pneg %p826
    $region19: #{rnn_wm_forward.1} parent=1 // pred_check_branch
      %829 = sbr.rel (%p827) target = $region21
    $region20: #{rnn_wm_forward.1} parent=1 // pred_region
      %v830 = vmul.f32 %v822, %v822
      %v831 = vmul.f32 %v823, %v823
      %v832 = vmul.f32 %v824, %v824
      %v833 = vmul.f32 %v825, %v825
      %v834 = vadd.f32 %v830, %v831
      %v835 = vadd.f32 %v834, %v832
      %v836 = vadd.f32 %v835, %v833
      %837 = vst [vmem:[%s4] sm:$0xff] %v836
    $region21: #{rnn_wm_forward.1} parent=1 // pred_fallthru
      _
    %p838 = scmp.eq.s32.totalorder 0, 0
    // Predicated region
    $region22: #{rnn_wm_forward.1} parent=1 // pred_check
      %p839 = pneg %p838
    $region23: #{rnn_wm_forward.1} parent=1 // pred_check_branch
      %841 = sbr.rel (%p839) target = $region25
    $region24: #{rnn_wm_forward.1} parent=1 // pred_region
      %s842 = smul.u32 0, 32
      %v843 = vlaneseq
      %v844 = vshrl.u32 %v843, 7
      %v845 = vadd.s32 %v844, 8
      %v846 = vadd.s32 %v844, 16
      %v847 = vadd.s32 %v844, 24
      %v848 = vstv %s842
      %v849 = vadd.s32 %v848, %v844
      %v850 = vadd.s32 %v848, %v845
      %v851 = vadd.s32 %v848, %v846
      %v852 = vadd.s32 %v848, %v847
      %vm853 = vcmp.lt.s32.totalorder %v849, 8
      %vm854 = vcmp.lt.s32.totalorder %v850, 8
      %vm855 = vcmp.lt.s32.totalorder %v851, 8
      %vm856 = vcmp.lt.s32.totalorder %v852, 8
      %v857 = vsel %vm853, %v822, 0.0
      %v858 = vsel %vm854, %v823, 0.0
      %v859 = vsel %vm855, %v824, 0.0
      %v860 = vsel %vm856, %v825, 0.0
      %v861 = vmul.f32 %v857, %v857
      %v862 = vmul.f32 %v858, %v858
      %v863 = vmul.f32 %v859, %v859
      %v864 = vmul.f32 %v860, %v860
      %v865 = vadd.f32 %v861, %v862
      %v866 = vadd.f32 %v865, %v863
      %v867 = vadd.f32 %v866, %v864
      %868 = vst [vmem:[%s4] sm:$0xff] %v867
    $region25: #{rnn_wm_forward.1} parent=1 // pred_fallthru
      _
    // Predicated region
    $region26: #{rnn_wm_forward.1} parent=1 // pred_check
      _
    $region27: #{rnn_wm_forward.1} parent=1 // pred_check_branch
      %870 = sbr.rel (0) target = $region29
    $region28: #{rnn_wm_forward.1} parent=1 // pred_region
      _
    $region29: #{rnn_wm_forward.1} parent=1 // pred_fallthru
      _
    // Predicated region
    $region30: #{rnn_wm_forward.1} parent=1 // pred_check
      _
    $region31: #{rnn_wm_forward.1} parent=1 // pred_check_branch
      %872 = sbr.rel (0) target = $region33
    $region32: #{rnn_wm_forward.1} parent=1 // pred_region
      _
    $region33: #{rnn_wm_forward.1} parent=1 // pred_fallthru
      _
    // Predicated region
    $region34: #{rnn_wm_forward.1} parent=1 // pred_check
      _
    $region35: #{rnn_wm_forward.1} parent=1 // pred_check_branch
      %874 = sbr.rel (0) target = $region37
    $region36: #{rnn_wm_forward.1} parent=1 // pred_region
      _
    $region37: #{rnn_wm_forward.1} parent=1 // pred_fallthru
      _
    // Predicated region
    $region38: #{rnn_wm_forward.1} parent=1 // pred_check
      _
    $region39: #{rnn_wm_forward.1} parent=1 // pred_check_branch
      %876 = sbr.rel (0) target = $region41
    $region40: #{rnn_wm_forward.1} parent=1 // pred_region
      _
    $region41: #{rnn_wm_forward.1} parent=1 // pred_fallthru
      _
    %877 = vsyncpa [#allocation3], 1

</llo_original>
